<compile_context>
chip_gen: v6e
topology: v6e:2x2x1
jax: 0.10.0
libtpu: 0.0.40
codegen_flags: <defaults>
</compile_context>

<pallas_src>
import jax
import jax.numpy as jnp
from jax.experimental import pallas as pl
from jax.experimental.pallas import tpu as pltpu


def _round_up(x, m):
    return ((x + m - 1) // m) * m


def feature_extractor_forward(x_nchw, params, matmul_dtype=jnp.float32):
    """x_nchw: (N, Cin, H, W) f32.  Returns (N, Cout, H, W) f32 (NCHW, like PyTorch)."""
    (w1, s1, b1), (w2, s2, b2) = params          # w*: (Cout, Cin, 3, 3) OIHW
    N, Cin, H, W = x_nchw.shape
    Cout = w1.shape[0]

    Cin_p = _round_up(Cin, 8)                    # sublane-align layer-1 patch rows
    Cout_p = _round_up(Cout, 8)

    # Wide padded row: >= W+2 (1 left pad + >=1 right pad) and L = H*Prow lane-dense.
    Prow = W + 2
    while (H * Prow) % 128 != 0:
        Prow += 1
    L = H * Prow                                  # wide output columns: c = h*Prow + w
    PF = (H + 3) * Prow                           # flat padded input (1 top + 2 bottom rows)
    PY = (H + 2) * Prow + 2                       # flat padded layer-1 output (VMEM only)

    # --- one small fused pad of the input (rows, cols AND channels), then flat reshape ---
    xp = jnp.pad(x_nchw, ((0, 0), (0, Cin_p - Cin), (1, 2), (1, Prow - 1 - W)))
    xp = xp.reshape(N, Cin_p, PF)

    # --- weights in im2col layout (Cout_p, 9*C_p), K order = (kh, kw, cin);
    #     BN scale folded into the output-channel rows ---
    def prep_w(w, s, cin_p, cout_p):
        o, i = w.shape[0], w.shape[1]
        wk = jnp.transpose(w, (0, 2, 3, 1))                       # (O, 3, 3, I)
        wk = jnp.pad(wk, ((0, 0), (0, 0), (0, 0), (0, cin_p - i)))
        wk = wk.reshape(o, 9 * cin_p) * s.reshape(o, 1)           # fold BN scale
        return jnp.pad(wk, ((0, cout_p - o), (0, 0)))

    w1m = prep_w(w1, s1, Cin_p, Cout_p)
    w2m = prep_w(w2, s2, Cout_p, Cout_p)
    b1c = jnp.pad(b1.reshape(Cout, 1), ((0, Cout_p - Cout), (0, 0)))
    b2c = jnp.pad(b2.reshape(Cout, 1), ((0, Cout_p - Cout), (0, 0)))

    def kernel(xp_ref, w1_ref, b1_ref, w2_ref, b2_ref, o_ref, ypad_ref, p1_ref, p2_ref):
        # Column-validity mask (junk columns w >= W), built in-kernel: iota/mod/cmp.
        lane = jax.lax.broadcasted_iota(jnp.int32, (Cout_p, L), 1)
        valid = (lane % Prow) < W

        def build_patches(src_ref, p_ref, c):
            # 3 window loads per layer; kw=1,2 taps derived with an XLU lane roll.
            # roll-by-(L-k) == shift left by k; the k wrapped lanes land only in
            # junk columns of the last image row, which are masked / sliced away.
            for kh in range(3):
                base = kh * Prow
                v0 = src_ref[:, base:base + L]                 # tap (kh, kw=0), (c, L)
                v1 = pltpu.roll(v0, shift=L - 1, axis=1)       # tap (kh, kw=1)
                v2 = pltpu.roll(v0, shift=L - 2, axis=1)       # tap (kh, kw=2)
                r = 3 * kh * c
                p_ref[r:r + c, :] = v0
                p_ref[r + c:r + 2 * c, :] = v1
                p_ref[r + 2 * c:r + 3 * c, :] = v2

        # ---------------- layer 1: im2col + one (Cout_p, 9*Cin_p) matmul ----------------
        build_patches(xp_ref, p1_ref, Cin_p)
        a1 = jnp.dot(w1_ref[...].astype(matmul_dtype), p1_ref[...].astype(matmul_dtype),
                     preferred_element_type=jnp.float32)        # (Cout_p, L)
        y1 = jnp.where(valid, jnp.maximum(a1 + b1_ref[...], 0.0), 0.0)

        # Re-pad layer-1 output inside VMEM: zero ONLY the head/tail pad strips
        # (masked junk columns already put zeros on the interior pad positions).
        ypad_ref[:, 0:Prow + 1] = jnp.zeros((Cout_p, Prow + 1), jnp.float32)
        ypad_ref[:, Prow + 1 + L:PY] = jnp.zeros((Cout_p, PY - Prow - 1 - L), jnp.float32)
        ypad_ref[:, Prow + 1:Prow + 1 + L] = y1

        # ---------------- layer 2: im2col + one (Cout_p, 9*Cout_p) matmul ----------------
        build_patches(ypad_ref, p2_ref, Cout_p)
        a2 = jnp.dot(w2_ref[...].astype(matmul_dtype), p2_ref[...].astype(matmul_dtype),
                     preferred_element_type=jnp.float32)
        o_ref[...] = jnp.maximum(a2 + b2_ref[...], 0.0).astype(o_ref.dtype)   # lane-dense vst

    out_wide = pl.pallas_call(
        kernel,
        out_shape=jax.ShapeDtypeStruct((N, Cout_p, L), x_nchw.dtype),
        grid=(N,),
        in_specs=[
            pl.BlockSpec((pl.Squeezed(), Cin_p, PF), lambda n: (n, 0, 0)),
            # Constant-index weight/bias blocks: Pallas skips re-DMA when the
            # block index is unchanged across grid steps.
            pl.BlockSpec((Cout_p, 9 * Cin_p), lambda n: (0, 0)),
            pl.BlockSpec((Cout_p, 1), lambda n: (0, 0)),
            pl.BlockSpec((Cout_p, 9 * Cout_p), lambda n: (0, 0)),
            pl.BlockSpec((Cout_p, 1), lambda n: (0, 0)),
        ],
        out_specs=pl.BlockSpec((pl.Squeezed(), Cout_p, L), lambda n: (n, 0, 0)),
        scratch_shapes=[
            pltpu.VMEM((Cout_p, PY), jnp.float32),       # padded layer-1 output
            pltpu.VMEM((9 * Cin_p, L), jnp.float32),     # im2col patches, layer 1
            pltpu.VMEM((9 * Cout_p, L), jnp.float32),    # im2col patches, layer 2
        ],
        # "parallel" lets the batch axis shard across both TensorCores on v7x.
        compiler_params=pltpu.CompilerParams(dimension_semantics=("parallel",)),
    )(xp, w1m, b1c, w2m, b2c)

    # (N, Cout_p, H*Prow) -> (N, Cout_p, H, Prow) is metadata-only; drop padded
    # channels and the junk columns per row.
    return out_wide.reshape(N, Cout_p, H, Prow)[:, :Cout, :, :W]


def init_feature_extractor_params(key, in_channels, out_channels):
    """Deterministic params matching FeatureExtractor.__init__ (BN in eval form)."""
    k1, k2 = jax.random.split(key)
    eps = 1e-5

    def conv_w(k, cin, cout):
        fan_in = cin * 9
        return (jax.random.normal(k, (cout, cin, 3, 3), jnp.float32)
                * (2.0 / fan_in) ** 0.5)

    def bn_fold(cout):
        gamma = jnp.ones((cout,), jnp.float32)
        beta = jnp.zeros((cout,), jnp.float32)
        running_mean = jnp.zeros((cout,), jnp.float32)
        running_var = jnp.ones((cout,), jnp.float32)
        scale = gamma / jnp.sqrt(running_var + eps)
        bias = beta - running_mean * scale
        return scale, bias

    w1 = conv_w(k1, in_channels, out_channels)
    w2 = conv_w(k2, out_channels, out_channels)
    s1, b1 = bn_fold(out_channels)
    s2, b2 = bn_fold(out_channels)
    return (w1, s1, b1), (w2, s2, b2)


def _reference_forward(x_nchw, params):
    """Plain-JAX reference (sanity check for the Pallas kernel)."""
    (w1, s1, b1), (w2, s2, b2) = params

    def layer(x, w, s, b):
        y = jax.lax.conv_general_dilated(
            x, w, window_strides=(1, 1), padding="SAME",
            dimension_numbers=("NCHW", "OIHW", "NCHW"))
        y = y * s.reshape(1, -1, 1, 1) + b.reshape(1, -1, 1, 1)
        return jnp.maximum(y, 0.0)

    return layer(layer(x_nchw, w1, s1, b1), w2, s2, b2)


if __name__ == "__main__":
    key = jax.random.PRNGKey(0)
    kx, kp = jax.random.split(key)

    N, Cin, Cout, H, W = 2, 4, 8, 16, 16
    x = jax.random.normal(kx, (N, Cin, H, W), jnp.float32)   # NCHW, like PyTorch

    params = init_feature_extractor_params(kp, Cin, Cout)

    # TODO(synk): BatchNorm2d training-mode (batch-statistics) update has no
    # counterpart here; the kernel implements eval-mode folded scale/bias.
    fwd = jax.jit(lambda xx: feature_extractor_forward(xx, params))
    out = jax.block_until_ready(fwd(x))

    ref = jax.block_until_ready(_reference_forward(x, params))
    assert out.shape == (N, Cout, H, W)
    err = float(jnp.max(jnp.abs(out - ref)))
    assert jnp.allclose(out, ref, atol=1e-3, rtol=1e-3), err

    print("KERNEL_OK")
</pallas_src>

<mosaic_0001>
module attributes {stable_mosaic.version = 11 : i64} {
  func.func @kernel(%arg0: i32, %arg1: memref<1x8x456xf32, #tpu.memory_space<vmem>>, %arg2: memref<8x72xf32, #tpu.memory_space<vmem>>, %arg3: memref<8x1xf32, #tpu.memory_space<vmem>>, %arg4: memref<8x72xf32, #tpu.memory_space<vmem>>, %arg5: memref<8x1xf32, #tpu.memory_space<vmem>>, %arg6: memref<1x8x384xf32, #tpu.memory_space<vmem>>, %arg7: memref<8x434xf32, #tpu.memory_space<vmem>>, %arg8: memref<72x384xf32, #tpu.memory_space<vmem>>, %arg9: memref<72x384xf32, #tpu.memory_space<vmem>>) attributes {dimension_semantics = [#tpu.dimension_semantics<parallel>], iteration_bounds = array<i64: 2>, scalar_prefetch = 0 : i64, scratch_operands = 3 : i64, tpu.core_type = #tpu.core_type<tc>, window_params = [{transform_indices = @transform_0, window_bounds = array<i64: 1, 8, 456>}, {pipeline_mode = #tpu.pipeline_mode<synchronous>, transform_indices = @transform_1, window_bounds = array<i64: 8, 72>}, {pipeline_mode = #tpu.pipeline_mode<synchronous>, transform_indices = @transform_2, window_bounds = array<i64: 8, 1>}, {pipeline_mode = #tpu.pipeline_mode<synchronous>, transform_indices = @transform_3, window_bounds = array<i64: 8, 72>}, {pipeline_mode = #tpu.pipeline_mode<synchronous>, transform_indices = @transform_4, window_bounds = array<i64: 8, 1>}, {transform_indices = @transform_5, window_bounds = array<i64: 1, 8, 384>}]} {
    %0 = tpu.iota {dimensions = array<i32: 1>} : vector<8x384xi32>
    %c24_i32 = arith.constant 24 : i32
    %c0_i32 = arith.constant 0 : i32
    %1 = arith.cmpi eq, %c24_i32, %c0_i32 : i32
    %c1_i32 = arith.constant 1 : i32
    %2 = arith.select %1, %c1_i32, %c24_i32 : i32
    %3 = vector.broadcast %2 : i32 to vector<8x384xi32>
    %4 = arith.remsi %0, %3 : vector<8x384xi32>
    %c0_i32_0 = arith.constant 0 : i32
    %5 = vector.broadcast %c0_i32_0 : i32 to vector<8x384xi32>
    %6 = arith.cmpi ne, %4, %5 : vector<8x384xi32>
    %c0_i32_1 = arith.constant 0 : i32
    %7 = vector.broadcast %c0_i32_1 : i32 to vector<8x384xi32>
    %8 = arith.cmpi slt, %4, %7 : vector<8x384xi32>
    %c0_i32_2 = arith.constant 0 : i32
    %9 = arith.cmpi slt, %2, %c0_i32_2 : i32
    %10 = vector.broadcast %9 : i1 to vector<8x384xi1>
    %11 = vector.broadcast %10 : vector<8x384xi1> to vector<8x384xi1>
    %12 = arith.xori %8, %11 : vector<8x384xi1>
    %13 = arith.andi %12, %6 : vector<8x384xi1>
    %14 = vector.broadcast %2 : i32 to vector<8x384xi32>
    %15 = arith.addi %4, %14 : vector<8x384xi32>
    %16 = arith.select %13, %15, %4 : vector<8x384xi1>, vector<8x384xi32>
    %c16_i32 = arith.constant 16 : i32
    %17 = vector.broadcast %c16_i32 : i32 to vector<8x384xi32>
    %18 = arith.cmpi slt, %16, %17 : vector<8x384xi32>
    %c0 = arith.constant 0 : index
    %c0_3 = arith.constant 0 : index
    %c0_4 = arith.constant 0 : index
    %19 = vector.load %arg1[%c0, %c0_3, %c0_4] : memref<1x8x456xf32, #tpu.memory_space<vmem>>, vector<1x8x384xf32>
    %20 = vector.shape_cast %19 : vector<1x8x384xf32> to vector<8x384xf32>
    %c383_i32 = arith.constant 383 : i32
    %21 = tpu.dynamic_rotate %20 by %c383_i32 dim 1 : vector<8x384xf32>, i32 -> vector<8x384xf32>
    %c382_i32 = arith.constant 382 : i32
    %22 = tpu.dynamic_rotate %20 by %c382_i32 dim 1 : vector<8x384xf32>, i32 -> vector<8x384xf32>
    %c0_5 = arith.constant 0 : index
    %c0_6 = arith.constant 0 : index
    %23 = vector.load %arg8[%c0_5, %c0_6] : memref<72x384xf32, #tpu.memory_space<vmem>>, vector<8x384xf32>
    tpu.vector_store %arg8[%c0_5, %c0_6], %20 {strides = array<i32>} : memref<72x384xf32, #tpu.memory_space<vmem>>, vector<8x384xf32>,
    %c8 = arith.constant 8 : index
    %c0_7 = arith.constant 0 : index
    %24 = vector.load %arg8[%c8, %c0_7] : memref<72x384xf32, #tpu.memory_space<vmem>>, vector<8x384xf32>
    tpu.vector_store %arg8[%c8, %c0_7], %21 {strides = array<i32>} : memref<72x384xf32, #tpu.memory_space<vmem>>, vector<8x384xf32>,
    %c16 = arith.constant 16 : index
    %c0_8 = arith.constant 0 : index
    %25 = vector.load %arg8[%c16, %c0_8] : memref<72x384xf32, #tpu.memory_space<vmem>>, vector<8x384xf32>
    tpu.vector_store %arg8[%c16, %c0_8], %22 {strides = array<i32>} : memref<72x384xf32, #tpu.memory_space<vmem>>, vector<8x384xf32>,
    %c0_9 = arith.constant 0 : index
    %c0_10 = arith.constant 0 : index
    %c24 = arith.constant 24 : index
    %26 = vector.load %arg1[%c0_9, %c0_10, %c24] : memref<1x8x456xf32, #tpu.memory_space<vmem>>, vector<1x8x384xf32>
    %27 = vector.shape_cast %26 : vector<1x8x384xf32> to vector<8x384xf32>
    %c383_i32_11 = arith.constant 383 : i32
    %28 = tpu.dynamic_rotate %27 by %c383_i32_11 dim 1 : vector<8x384xf32>, i32 -> vector<8x384xf32>
    %c382_i32_12 = arith.constant 382 : i32
    %29 = tpu.dynamic_rotate %27 by %c382_i32_12 dim 1 : vector<8x384xf32>, i32 -> vector<8x384xf32>
    %c24_13 = arith.constant 24 : index
    %c0_14 = arith.constant 0 : index
    %30 = vector.load %arg8[%c24_13, %c0_14] : memref<72x384xf32, #tpu.memory_space<vmem>>, vector<8x384xf32>
    tpu.vector_store %arg8[%c24_13, %c0_14], %27 {strides = array<i32>} : memref<72x384xf32, #tpu.memory_space<vmem>>, vector<8x384xf32>,
    %c32 = arith.constant 32 : index
    %c0_15 = arith.constant 0 : index
    %31 = vector.load %arg8[%c32, %c0_15] : memref<72x384xf32, #tpu.memory_space<vmem>>, vector<8x384xf32>
    tpu.vector_store %arg8[%c32, %c0_15], %28 {strides = array<i32>} : memref<72x384xf32, #tpu.memory_space<vmem>>, vector<8x384xf32>,
    %c40 = arith.constant 40 : index
    %c0_16 = arith.constant 0 : index
    %32 = vector.load %arg8[%c40, %c0_16] : memref<72x384xf32, #tpu.memory_space<vmem>>, vector<8x384xf32>
    tpu.vector_store %arg8[%c40, %c0_16], %29 {strides = array<i32>} : memref<72x384xf32, #tpu.memory_space<vmem>>, vector<8x384xf32>,
    %c0_17 = arith.constant 0 : index
    %c0_18 = arith.constant 0 : index
    %c48 = arith.constant 48 : index
    %33 = vector.load %arg1[%c0_17, %c0_18, %c48] : memref<1x8x456xf32, #tpu.memory_space<vmem>>, vector<1x8x384xf32>
    %34 = vector.shape_cast %33 : vector<1x8x384xf32> to vector<8x384xf32>
    %c383_i32_19 = arith.constant 383 : i32
    %35 = tpu.dynamic_rotate %34 by %c383_i32_19 dim 1 : vector<8x384xf32>, i32 -> vector<8x384xf32>
    %c382_i32_20 = arith.constant 382 : i32
    %36 = tpu.dynamic_rotate %34 by %c382_i32_20 dim 1 : vector<8x384xf32>, i32 -> vector<8x384xf32>
    %c48_21 = arith.constant 48 : index
    %c0_22 = arith.constant 0 : index
    %37 = vector.load %arg8[%c48_21, %c0_22] : memref<72x384xf32, #tpu.memory_space<vmem>>, vector<8x384xf32>
    tpu.vector_store %arg8[%c48_21, %c0_22], %34 {strides = array<i32>} : memref<72x384xf32, #tpu.memory_space<vmem>>, vector<8x384xf32>,
    %c56 = arith.constant 56 : index
    %c0_23 = arith.constant 0 : index
    %38 = vector.load %arg8[%c56, %c0_23] : memref<72x384xf32, #tpu.memory_space<vmem>>, vector<8x384xf32>
    tpu.vector_store %arg8[%c56, %c0_23], %35 {strides = array<i32>} : memref<72x384xf32, #tpu.memory_space<vmem>>, vector<8x384xf32>,
    %c64 = arith.constant 64 : index
    %c0_24 = arith.constant 0 : index
    %39 = vector.load %arg8[%c64, %c0_24] : memref<72x384xf32, #tpu.memory_space<vmem>>, vector<8x384xf32>
    tpu.vector_store %arg8[%c64, %c0_24], %36 {strides = array<i32>} : memref<72x384xf32, #tpu.memory_space<vmem>>, vector<8x384xf32>,
    %c0_25 = arith.constant 0 : index
    %c0_26 = arith.constant 0 : index
    %40 = vector.load %arg2[%c0_25, %c0_26] : memref<8x72xf32, #tpu.memory_space<vmem>>, vector<8x72xf32>
    %c0_27 = arith.constant 0 : index
    %c0_28 = arith.constant 0 : index
    %41 = vector.load %arg8[%c0_27, %c0_28] : memref<72x384xf32, #tpu.memory_space<vmem>>, vector<72x384xf32>
    %cst = arith.constant dense<0.000000e+00> : vector<8x384xf32>
    %42 = tpu.matmul %40, %41, %cst {dimension_numbers = #tpu.dot_dimension_numbers<[1], [0], [0], [1], [0, 0, 1, 1], [], []>} : vector<8x72xf32>, vector<72x384xf32>, vector<8x384xf32> -> vector<8x384xf32>
    %c0_29 = arith.constant 0 : index
    %c0_30 = arith.constant 0 : index
    %43 = vector.load %arg3[%c0_29, %c0_30] : memref<8x1xf32, #tpu.memory_space<vmem>>, vector<8x1xf32>
    %44 = vector.broadcast %43 : vector<8x1xf32> to vector<8x384xf32>
    %45 = arith.addf %42, %44 : vector<8x384xf32>
    %cst_31 = arith.constant 0.000000e+00 : f32
    %46 = vector.broadcast %cst_31 : f32 to vector<8x384xf32>
    %47 = arith.maximumf %45, %46 : vector<8x384xf32>
    %cst_32 = arith.constant 0.000000e+00 : f32
    %48 = vector.broadcast %cst_32 : f32 to vector<8x384xf32>
    %49 = arith.select %18, %47, %48 : vector<8x384xi1>, vector<8x384xf32>
    %cst_33 = arith.constant 0.000000e+00 : f32
    %50 = vector.broadcast %cst_33 : f32 to vector<8x25xf32>
    %c0_34 = arith.constant 0 : index
    %c0_35 = arith.constant 0 : index
    %51 = vector.load %arg7[%c0_34, %c0_35] : memref<8x434xf32, #tpu.memory_space<vmem>>, vector<8x25xf32>
    tpu.vector_store %arg7[%c0_34, %c0_35], %50 {strides = array<i32>} : memref<8x434xf32, #tpu.memory_space<vmem>>, vector<8x25xf32>,
    %cst_36 = arith.constant 0.000000e+00 : f32
    %52 = vector.broadcast %cst_36 : f32 to vector<8x25xf32>
    %c0_37 = arith.constant 0 : index
    %c409 = arith.constant 409 : index
    %53 = vector.load %arg7[%c0_37, %c409] : memref<8x434xf32, #tpu.memory_space<vmem>>, vector<8x25xf32>
    tpu.vector_store %arg7[%c0_37, %c409], %52 {strides = array<i32>} : memref<8x434xf32, #tpu.memory_space<vmem>>, vector<8x25xf32>,
    %c0_38 = arith.constant 0 : index
    %c25 = arith.constant 25 : index
    %54 = vector.load %arg7[%c0_38, %c25] : memref<8x434xf32, #tpu.memory_space<vmem>>, vector<8x384xf32>
    tpu.vector_store %arg7[%c0_38, %c25], %49 {strides = array<i32>} : memref<8x434xf32, #tpu.memory_space<vmem>>, vector<8x384xf32>,
    %c0_39 = arith.constant 0 : index
    %c0_40 = arith.constant 0 : index
    %55 = vector.load %arg7[%c0_39, %c0_40] : memref<8x434xf32, #tpu.memory_space<vmem>>, vector<8x384xf32>
    %c383_i32_41 = arith.constant 383 : i32
    %56 = tpu.dynamic_rotate %55 by %c383_i32_41 dim 1 : vector<8x384xf32>, i32 -> vector<8x384xf32>
    %c382_i32_42 = arith.constant 382 : i32
    %57 = tpu.dynamic_rotate %55 by %c382_i32_42 dim 1 : vector<8x384xf32>, i32 -> vector<8x384xf32>
    %c0_43 = arith.constant 0 : index
    %c0_44 = arith.constant 0 : index
    %58 = vector.load %arg9[%c0_43, %c0_44] : memref<72x384xf32, #tpu.memory_space<vmem>>, vector<8x384xf32>
    tpu.vector_store %arg9[%c0_43, %c0_44], %55 {strides = array<i32>} : memref<72x384xf32, #tpu.memory_space<vmem>>, vector<8x384xf32>,
    %c8_45 = arith.constant 8 : index
    %c0_46 = arith.constant 0 : index
    %59 = vector.load %arg9[%c8_45, %c0_46] : memref<72x384xf32, #tpu.memory_space<vmem>>, vector<8x384xf32>
    tpu.vector_store %arg9[%c8_45, %c0_46], %56 {strides = array<i32>} : memref<72x384xf32, #tpu.memory_space<vmem>>, vector<8x384xf32>,
    %c16_47 = arith.constant 16 : index
    %c0_48 = arith.constant 0 : index
    %60 = vector.load %arg9[%c16_47, %c0_48] : memref<72x384xf32, #tpu.memory_space<vmem>>, vector<8x384xf32>
    tpu.vector_store %arg9[%c16_47, %c0_48], %57 {strides = array<i32>} : memref<72x384xf32, #tpu.memory_space<vmem>>, vector<8x384xf32>,
    %c0_49 = arith.constant 0 : index
    %c24_50 = arith.constant 24 : index
    %61 = vector.load %arg7[%c0_49, %c24_50] : memref<8x434xf32, #tpu.memory_space<vmem>>, vector<8x384xf32>
    %c383_i32_51 = arith.constant 383 : i32
    %62 = tpu.dynamic_rotate %61 by %c383_i32_51 dim 1 : vector<8x384xf32>, i32 -> vector<8x384xf32>
    %c382_i32_52 = arith.constant 382 : i32
    %63 = tpu.dynamic_rotate %61 by %c382_i32_52 dim 1 : vector<8x384xf32>, i32 -> vector<8x384xf32>
    %c24_53 = arith.constant 24 : index
    %c0_54 = arith.constant 0 : index
    %64 = vector.load %arg9[%c24_53, %c0_54] : memref<72x384xf32, #tpu.memory_space<vmem>>, vector<8x384xf32>
    tpu.vector_store %arg9[%c24_53, %c0_54], %61 {strides = array<i32>} : memref<72x384xf32, #tpu.memory_space<vmem>>, vector<8x384xf32>,
    %c32_55 = arith.constant 32 : index
    %c0_56 = arith.constant 0 : index
    %65 = vector.load %arg9[%c32_55, %c0_56] : memref<72x384xf32, #tpu.memory_space<vmem>>, vector<8x384xf32>
    tpu.vector_store %arg9[%c32_55, %c0_56], %62 {strides = array<i32>} : memref<72x384xf32, #tpu.memory_space<vmem>>, vector<8x384xf32>,
    %c40_57 = arith.constant 40 : index
    %c0_58 = arith.constant 0 : index
    %66 = vector.load %arg9[%c40_57, %c0_58] : memref<72x384xf32, #tpu.memory_space<vmem>>, vector<8x384xf32>
    tpu.vector_store %arg9[%c40_57, %c0_58], %63 {strides = array<i32>} : memref<72x384xf32, #tpu.memory_space<vmem>>, vector<8x384xf32>,
    %c0_59 = arith.constant 0 : index
    %c48_60 = arith.constant 48 : index
    %67 = vector.load %arg7[%c0_59, %c48_60] : memref<8x434xf32, #tpu.memory_space<vmem>>, vector<8x384xf32>
    %c383_i32_61 = arith.constant 383 : i32
    %68 = tpu.dynamic_rotate %67 by %c383_i32_61 dim 1 : vector<8x384xf32>, i32 -> vector<8x384xf32>
    %c382_i32_62 = arith.constant 382 : i32
    %69 = tpu.dynamic_rotate %67 by %c382_i32_62 dim 1 : vector<8x384xf32>, i32 -> vector<8x384xf32>
    %c48_63 = arith.constant 48 : index
    %c0_64 = arith.constant 0 : index
    %70 = vector.load %arg9[%c48_63, %c0_64] : memref<72x384xf32, #tpu.memory_space<vmem>>, vector<8x384xf32>
    tpu.vector_store %arg9[%c48_63, %c0_64], %67 {strides = array<i32>} : memref<72x384xf32, #tpu.memory_space<vmem>>, vector<8x384xf32>,
    %c56_65 = arith.constant 56 : index
    %c0_66 = arith.constant 0 : index
    %71 = vector.load %arg9[%c56_65, %c0_66] : memref<72x384xf32, #tpu.memory_space<vmem>>, vector<8x384xf32>
    tpu.vector_store %arg9[%c56_65, %c0_66], %68 {strides = array<i32>} : memref<72x384xf32, #tpu.memory_space<vmem>>, vector<8x384xf32>,
    %c64_67 = arith.constant 64 : index
    %c0_68 = arith.constant 0 : index
    %72 = vector.load %arg9[%c64_67, %c0_68] : memref<72x384xf32, #tpu.memory_space<vmem>>, vector<8x384xf32>
    tpu.vector_store %arg9[%c64_67, %c0_68], %69 {strides = array<i32>} : memref<72x384xf32, #tpu.memory_space<vmem>>, vector<8x384xf32>,
    %c0_69 = arith.constant 0 : index
    %c0_70 = arith.constant 0 : index
    %73 = vector.load %arg4[%c0_69, %c0_70] : memref<8x72xf32, #tpu.memory_space<vmem>>, vector<8x72xf32>
    %c0_71 = arith.constant 0 : index
    %c0_72 = arith.constant 0 : index
    %74 = vector.load %arg9[%c0_71, %c0_72] : memref<72x384xf32, #tpu.memory_space<vmem>>, vector<72x384xf32>
    %cst_73 = arith.constant dense<0.000000e+00> : vector<8x384xf32>
    %75 = tpu.matmul %73, %74, %cst_73 {dimension_numbers = #tpu.dot_dimension_numbers<[1], [0], [0], [1], [0, 0, 1, 1], [], []>} : vector<8x72xf32>, vector<72x384xf32>, vector<8x384xf32> -> vector<8x384xf32>
    %c0_74 = arith.constant 0 : index
    %c0_75 = arith.constant 0 : index
    %76 = vector.load %arg5[%c0_74, %c0_75] : memref<8x1xf32, #tpu.memory_space<vmem>>, vector<8x1xf32>
    %77 = vector.broadcast %76 : vector<8x1xf32> to vector<8x384xf32>
    %78 = arith.addf %75, %77 : vector<8x384xf32>
    %cst_76 = arith.constant 0.000000e+00 : f32
    %79 = vector.broadcast %cst_76 : f32 to vector<8x384xf32>
    %80 = arith.maximumf %78, %79 : vector<8x384xf32>
    %c0_77 = arith.constant 0 : index
    %c0_78 = arith.constant 0 : index
    %c0_79 = arith.constant 0 : index
    %81 = vector.load %arg6[%c0_77, %c0_78, %c0_79] : memref<1x8x384xf32, #tpu.memory_space<vmem>>, vector<1x8x384xf32>
    %82 = vector.shape_cast %81 : vector<1x8x384xf32> to vector<8x384xf32>
    %83 = vector.shape_cast %80 : vector<8x384xf32> to vector<1x8x384xf32>
    tpu.vector_store %arg6[%c0_77, %c0_78, %c0_79], %83 {strides = array<i32>} : memref<1x8x384xf32, #tpu.memory_space<vmem>>, vector<1x8x384xf32>,
    return
  }
  func.func @transform_0(%arg0: i32) -> (i32, i32, i32) {
    %c0_i32 = arith.constant 0 : i32
    %c0_i32_0 = arith.constant 0 : i32
    %c0_i32_1 = arith.constant 0 : i32
    return %arg0, %c0_i32, %c0_i32_0 : i32, i32, i32
  }
  func.func @transform_1(%arg0: i32) -> (i32, i32) {
    %c0_i32 = arith.constant 0 : i32
    %c0_i32_0 = arith.constant 0 : i32
    %c0_i32_1 = arith.constant 0 : i32
    return %c0_i32, %c0_i32_0 : i32, i32
  }
  func.func @transform_2(%arg0: i32) -> (i32, i32) {
    %c0_i32 = arith.constant 0 : i32
    %c0_i32_0 = arith.constant 0 : i32
    %c0_i32_1 = arith.constant 0 : i32
    return %c0_i32, %c0_i32_0 : i32, i32
  }
  func.func @transform_3(%arg0: i32) -> (i32, i32) {
    %c0_i32 = arith.constant 0 : i32
    %c0_i32_0 = arith.constant 0 : i32
    %c0_i32_1 = arith.constant 0 : i32
    return %c0_i32, %c0_i32_0 : i32, i32
  }
  func.func @transform_4(%arg0: i32) -> (i32, i32) {
    %c0_i32 = arith.constant 0 : i32
    %c0_i32_0 = arith.constant 0 : i32
    %c0_i32_1 = arith.constant 0 : i32
    return %c0_i32, %c0_i32_0 : i32, i32
  }
  func.func @transform_5(%arg0: i32) -> (i32, i32, i32) {
    %c0_i32 = arith.constant 0 : i32
    %c0_i32_0 = arith.constant 0 : i32
    %c0_i32_1 = arith.constant 0 : i32
    return %arg0, %c0_i32, %c0_i32_0 : i32, i32, i32
  }
}

</mosaic_0001>

<llo_original>
// kernel: _lambda_.1
$region0: #{_lambda_.1}
  #allocation0 [shape = 'u32[]', space=smem, size = 0x4, offset = 0x4, fixed_abs, tag = 'smem constant byte address 0x4 - core index']
  #allocation1 [shape = 'u32[144,128]{1,0:T(1,128)}', space=vmem, size = 0x12000, scoped, tag = 'internal scratch']
  #allocation2 [shape = 'f32[8,434]{1,0:T(8,128)}', space=vmem, size = 0x4000, scoped, tag = 'scratch operand']
  #allocation3 [shape = 'f32[72,384]{1,0:T(8,128)}', space=vmem, size = 0x1b000, scoped, tag = 'scratch operand']
  #allocation4 [shape = 'f32[72,384]{1,0:T(8,128)}', space=vmem, size = 0x1b000, scoped, tag = 'scratch operand']
  %s0 = inlined_call_operand.vmem [shape: f32[2,8,456], index: 0, kind: input, shape index: {}]
  %s1 = inlined_call_operand.vmem [shape: f32[8,72], index: 1, kind: input, shape index: {}]
  %s2 = inlined_call_operand.vmem [shape: f32[8,1], index: 2, kind: input, shape index: {}, may-alias: {2,4}]
  %s3 = inlined_call_operand.vmem [shape: f32[8,72], index: 3, kind: input, shape index: {}]
  %s4 = inlined_call_operand.vmem [shape: f32[8,1], index: 4, kind: input, shape index: {}, may-alias: {2,4}]
  %s5 = inlined_call_operand.vmem [shape: f32[2,8,384], index: 5, kind: output, shape index: {}]
  %s6 = sld [smem:[#allocation0]]
  $region53: #{_lambda_.1} parent=0
    _
  %s8 = ssub.s32 1, %s6
  %s9 = scalar_select 0, %s8, %s6
  loop: start=0, step=1, limit=4
  $region2: #{_lambda_.1} parent=0 // loop_pre_header
    _
  $region3: #{_lambda_.1} parent=0 // loop_header
    %s11 = sphi 0, %s15
    %p12 = scmp.ge.s32.totalorder %s11, 4
    %s21 = sphi 0, %s23
    %s24 = sphi 0, %s21
    %s25 = sphi 0, %s24
    %s41 = sphi 0, %s25
    %s45 = sphi 0, %s45
    %s47 = sphi 0, %s45
    %s48 = sphi 0, %s47
    %s62 = sphi 0, %s48
    %s66 = sphi 0, %s66
    %s68 = sphi 0, %s66
    %s69 = sphi 0, %s68
    %s83 = sphi 0, %s69
    %s87 = sphi 0, %s87
    %s89 = sphi 0, %s87
    %s90 = sphi 0, %s89
    %s104 = sphi 0, %s90
    %s108 = sphi 0, %s108
    %s110 = sphi 0, %s108
    %s111 = sphi 0, %s110
    %s125 = sphi 0, %s111
    %s131 = sphi 0, %s133
    %s134 = sphi 0, %s131
    %s135 = sphi 0, %s134
    %s151 = sphi 0, %s135
  $region4: #{_lambda_.1} parent=0 // loop_header_branch
    %14 = sbr.rel (%p12) target = $region8
  $region5: #{_lambda_.1} parent=0 // loop_body
    %s16 = ssub.s32 %s11, 1
    %s17 = ssub.s32 %s11, 2
    %s18 = sadd.s32 %s11, 1
    %s19 = ssub.s32 %s11, %s18
    %p20 = scmp.eq.s32.totalorder %s19, 0
    %s22 = sadd.s32 %s21, 1
    %s23 = scalar_select %p20, %s21, %s22
    %p26 = pneg %p20
    %p27 = scmp.eq.s32.totalorder %s11, 1
    %p28 = por %p26, %p27
    %p29 = scmp.ne.s32.totalorder %s21, %s24
    %p30 = scmp.eq.s32.totalorder %s11, 0
    %p31 = por %p29, %p30
    %p32 = scmp.ne.s32.totalorder %s21, %s24
    %p33 = scmp.eq.s32.totalorder %s16, 1
    %p34 = por %p32, %p33
    %p35 = scmp.ne.s32.totalorder %s24, %s25
    %p36 = scmp.eq.s32.totalorder %s16, 0
    %p37 = por %p35, %p36
    %p38 = scmp.ne.s32.totalorder %s24, %s25
    %p39 = scmp.eq.s32.totalorder %s17, 1
    %p40 = por %p38, %p39
    %p42 = scmp.ne.s32.totalorder %s25, %s41
    %p43 = scmp.eq.s32.totalorder %s17, 0
    %p44 = por %p42, %p43
    %s46 = sadd.s32 %s45, 1
    %p49 = scmp.eq.s32.totalorder %s11, 1
    %p50 = scmp.ne.s32.totalorder %s45, %s47
    %p51 = scmp.eq.s32.totalorder %s11, 0
    %p52 = por %p50, %p51
    %p53 = scmp.ne.s32.totalorder %s45, %s47
    %p54 = scmp.eq.s32.totalorder %s16, 1
    %p55 = por %p53, %p54
    %p56 = scmp.ne.s32.totalorder %s47, %s48
    %p57 = scmp.eq.s32.totalorder %s16, 0
    %p58 = por %p56, %p57
    %p59 = scmp.ne.s32.totalorder %s47, %s48
    %p60 = scmp.eq.s32.totalorder %s17, 1
    %p61 = por %p59, %p60
    %p63 = scmp.ne.s32.totalorder %s48, %s62
    %p64 = scmp.eq.s32.totalorder %s17, 0
    %p65 = por %p63, %p64
    %s67 = sadd.s32 %s66, 1
    %p70 = scmp.eq.s32.totalorder %s11, 1
    %p71 = scmp.ne.s32.totalorder %s66, %s68
    %p72 = scmp.eq.s32.totalorder %s11, 0
    %p73 = por %p71, %p72
    %p74 = scmp.ne.s32.totalorder %s66, %s68
    %p75 = scmp.eq.s32.totalorder %s16, 1
    %p76 = por %p74, %p75
    %p77 = scmp.ne.s32.totalorder %s68, %s69
    %p78 = scmp.eq.s32.totalorder %s16, 0
    %p79 = por %p77, %p78
    %p80 = scmp.ne.s32.totalorder %s68, %s69
    %p81 = scmp.eq.s32.totalorder %s17, 1
    %p82 = por %p80, %p81
    %p84 = scmp.ne.s32.totalorder %s69, %s83
    %p85 = scmp.eq.s32.totalorder %s17, 0
    %p86 = por %p84, %p85
    %s88 = sadd.s32 %s87, 1
    %p91 = scmp.eq.s32.totalorder %s11, 1
    %p92 = scmp.ne.s32.totalorder %s87, %s89
    %p93 = scmp.eq.s32.totalorder %s11, 0
    %p94 = por %p92, %p93
    %p95 = scmp.ne.s32.totalorder %s87, %s89
    %p96 = scmp.eq.s32.totalorder %s16, 1
    %p97 = por %p95, %p96
    %p98 = scmp.ne.s32.totalorder %s89, %s90
    %p99 = scmp.eq.s32.totalorder %s16, 0
    %p100 = por %p98, %p99
    %p101 = scmp.ne.s32.totalorder %s89, %s90
    %p102 = scmp.eq.s32.totalorder %s17, 1
    %p103 = por %p101, %p102
    %p105 = scmp.ne.s32.totalorder %s90, %s104
    %p106 = scmp.eq.s32.totalorder %s17, 0
    %p107 = por %p105, %p106
    %s109 = sadd.s32 %s108, 1
    %p112 = scmp.eq.s32.totalorder %s11, 1
    %p113 = scmp.ne.s32.totalorder %s108, %s110
    %p114 = scmp.eq.s32.totalorder %s11, 0
    %p115 = por %p113, %p114
    %p116 = scmp.ne.s32.totalorder %s108, %s110
    %p117 = scmp.eq.s32.totalorder %s16, 1
    %p118 = por %p116, %p117
    %p119 = scmp.ne.s32.totalorder %s110, %s111
    %p120 = scmp.eq.s32.totalorder %s16, 0
    %p121 = por %p119, %p120
    %p122 = scmp.ne.s32.totalorder %s110, %s111
    %p123 = scmp.eq.s32.totalorder %s17, 1
    %p124 = por %p122, %p123
    %p126 = scmp.ne.s32.totalorder %s111, %s125
    %p127 = scmp.eq.s32.totalorder %s17, 0
    %p128 = por %p126, %p127
    %s129 = ssub.s32 %s11, %s18
    %p130 = scmp.eq.s32.totalorder %s129, 0
    %s132 = sadd.s32 %s131, 1
    %s133 = scalar_select %p130, %s131, %s132
    %p136 = pneg %p130
    %p137 = scmp.eq.s32.totalorder %s11, 1
    %p138 = por %p136, %p137
    %p139 = scmp.ne.s32.totalorder %s131, %s134
    %p140 = scmp.eq.s32.totalorder %s11, 0
    %p141 = por %p139, %p140
    %p142 = scmp.ne.s32.totalorder %s131, %s134
    %p143 = scmp.eq.s32.totalorder %s16, 1
    %p144 = por %p142, %p143
    %p145 = scmp.ne.s32.totalorder %s134, %s135
    %p146 = scmp.eq.s32.totalorder %s16, 0
    %p147 = por %p145, %p146
    %p148 = scmp.ne.s32.totalorder %s134, %s135
    %p149 = scmp.eq.s32.totalorder %s17, 1
    %p150 = por %p148, %p149
    %p152 = scmp.ne.s32.totalorder %s135, %s151
    %p153 = scmp.eq.s32.totalorder %s17, 0
    %p154 = por %p152, %p153
    %p155 = scmp.le.s32.totalorder 1, %s11
    %p156 = scmp.lt.s32.totalorder %s11, 3
    %p157 = pnand %p155, %p156
    %p158 = pneg %p157
    // Predicated region
    $region9: #{_lambda_.1} parent=5 // pred_check
      _
    $region10: #{_lambda_.1} parent=5 // pred_check_branch
      %160 = sbr.rel (%p157) target = $region12
    $region11: #{_lambda_.1} parent=5 // pred_region
      %s161 = ssub.s32 %s11, 1
      // Predicated region
      $region13: #{_lambda_.1} parent=11 // pred_check
        %p162 = pneg %p58
      $region14: #{_lambda_.1} parent=11 // pred_check_branch
        %164 = sbr.rel (%p162) target = $region16
      $region15: #{_lambda_.1} parent=11 // pred_region
        _
      $region16: #{_lambda_.1} parent=11 // pred_fallthru
        _
      // Predicated region
      $region17: #{_lambda_.1} parent=11 // pred_check
        %p165 = pneg %p79
      $region18: #{_lambda_.1} parent=11 // pred_check_branch
        %167 = sbr.rel (%p165) target = $region20
      $region19: #{_lambda_.1} parent=11 // pred_region
        _
      $region20: #{_lambda_.1} parent=11 // pred_fallthru
        _
      // Predicated region
      $region21: #{_lambda_.1} parent=11 // pred_check
        %p168 = pneg %p100
      $region22: #{_lambda_.1} parent=11 // pred_check_branch
        %170 = sbr.rel (%p168) target = $region24
      $region23: #{_lambda_.1} parent=11 // pred_region
        _
      $region24: #{_lambda_.1} parent=11 // pred_fallthru
        _
      // Predicated region
      $region25: #{_lambda_.1} parent=11 // pred_check
        %p171 = pneg %p121
      $region26: #{_lambda_.1} parent=11 // pred_check_branch
        %173 = sbr.rel (%p171) target = $region28
      $region27: #{_lambda_.1} parent=11 // pred_region
        _
      $region28: #{_lambda_.1} parent=11 // pred_fallthru
        _
    $region12: #{_lambda_.1} parent=5 // pred_fallthru
      _
    %p174 = scmp.lt.s32.totalorder %s11, 2
    // Predicated region
    $region29: #{_lambda_.1} parent=5 // pred_check
      %p175 = pneg %p174
    $region30: #{_lambda_.1} parent=5 // pred_check_branch
      %177 = sbr.rel (%p175) target = $region32
    $region31: #{_lambda_.1} parent=5 // pred_region
      // Predicated region
      $region33: #{_lambda_.1} parent=31 // pred_check
        %p178 = pneg %p31
      $region34: #{_lambda_.1} parent=31 // pred_check_branch
        %180 = sbr.rel (%p178) target = $region36
      $region35: #{_lambda_.1} parent=31 // pred_region
        %p181 = scmp.lt.s32.totalorder %s11, 1
        %s182 = scalar_select %p181, %s11, 1
        %s183 = smul.addr %s182, 4
        %s184 = smul.addr %s183, 8
        %s185 = scalar_lea.vmem %s0, %s184
      $region36: #{_lambda_.1} parent=31 // pred_fallthru
        _
    $region32: #{_lambda_.1} parent=5 // pred_fallthru
      _
    %p186 = scmp.le.s32.totalorder 1, %s11
    %p187 = scmp.lt.s32.totalorder %s11, 3
    %p188 = pnand %p186, %p187
    %p189 = pneg %p188
    // Predicated region
    $region37: #{_lambda_.1} parent=5 // pred_check
      _
    $region38: #{_lambda_.1} parent=5 // pred_check_branch
      %191 = sbr.rel (%p188) target = $region40
    $region39: #{_lambda_.1} parent=5 // pred_region
      %s192 = ssub.s32 %s11, 1
      %p193 = scmp.lt.s32.totalorder %s16, 1
      %s194 = scalar_select %p193, %s16, 1
      %s195 = smul.addr %s194, 4
      %s196 = smul.addr %s195, 8
      %s197 = scalar_lea.vmem %s0, %s196
      %p198 = pneg %p37
      %p199 = pneg %p34
      %p200 = pneg %p58
      %p201 = pneg %p55
      %p202 = pneg %p79
      %p203 = pneg %p76
      %p204 = pneg %p100
      %p205 = pneg %p97
      %p206 = pneg %p121
      %p207 = pneg %p118
      %p208 = pneg %p147
      %p209 = pneg %p144
      %p210 = scmp.lt.s32.totalorder %s16, 1
      %s211 = scalar_select %p210, %s16, 1
      %s212 = smul.addr %s211, 3
      %s213 = smul.addr %s212, 8
      %s214 = scalar_lea.vmem %s5, %s213
      %p215 = scmp.lt.s32.totalorder %s16, 1
      %s216 = scalar_select %p215, %s16, 1
      %s217 = smul.addr %s216, 4
      %s218 = smul.addr %s217, 8
      %s219 = scalar_lea.vmem %s0, %s218
      %p220 = scmp.lt.s32.totalorder %s16, 1
      %s221 = scalar_select %p220, %s16, 1
      %s222 = smul.addr %s221, 3
      %s223 = smul.addr %s222, 8
      %s224 = scalar_lea.vmem %s5, %s223
      %v225 = vlaneseq
      %v226 = vand.u32 %v225, 127
      %v227 = vadd.s32 %v226, 128
      %v228 = vadd.s32 %v226, 256
      %vm229 = vcmp.lt.s32.totalorder %v226, 0
      %v230 = vsub.s32 0, %v226
      %v231 = vsel %vm229, %v230, %v226
      %v232 = vmul.u32.u64.compose %v231, 2863311531
      %v233 = vextract.low.u32 %v232
      %v234 = vextract.high.u32 %v232
      %v235 = vshrl.u32 %v234, 4
      %v236 = vmul.u32 %v235, 24
      %v237 = vsub.s32 %v231, %v236
      %v238 = vsub.s32 0, %v237
      %v239 = vsel %vm229, %v238, %v237
      %vm240 = vcmp.lt.s32.totalorder %v227, 0
      %v241 = vsub.s32 0, %v227
      %v242 = vsel %vm240, %v241, %v227
      %v243 = vmul.u32.u64.compose %v242, 2863311531
      %v244 = vextract.low.u32 %v243
      %v245 = vextract.high.u32 %v243
      %v246 = vshrl.u32 %v245, 4
      %v247 = vmul.u32 %v246, 24
      %v248 = vsub.s32 %v242, %v247
      %v249 = vsub.s32 0, %v248
      %v250 = vsel %vm240, %v249, %v248
      %vm251 = vcmp.lt.s32.totalorder %v228, 0
      %v252 = vsub.s32 0, %v228
      %v253 = vsel %vm251, %v252, %v228
      %v254 = vmul.u32.u64.compose %v253, 2863311531
      %v255 = vextract.low.u32 %v254
      %v256 = vextract.high.u32 %v254
      %v257 = vshrl.u32 %v256, 4
      %v258 = vmul.u32 %v257, 24
      %v259 = vsub.s32 %v253, %v258
      %v260 = vsub.s32 0, %v259
      %v261 = vsel %vm251, %v260, %v259
      %vm262 = vcmp.ne.s32.totalorder %v239, 0
      %vm263 = vcmp.ne.s32.totalorder %v250, 0
      %vm264 = vcmp.ne.s32.totalorder %v261, 0
      %vm265 = vcmp.lt.s32.totalorder %v239, 0
      %vm266 = vcmp.lt.s32.totalorder %v250, 0
      %vm267 = vcmp.lt.s32.totalorder %v261, 0
      %vm268 = vmand %vm265, %vm262
      %vm269 = vmand %vm266, %vm263
      %vm270 = vmand %vm267, %vm264
      %v271 = vadd.s32 %v239, 24
      %v272 = vadd.s32 %v250, 24
      %v273 = vadd.s32 %v261, 24
      %v274 = vsel %vm268, %v271, %v239
      %v275 = vsel %vm269, %v272, %v250
      %v276 = vsel %vm270, %v273, %v261
      %vm277 = vcmp.lt.s32.totalorder %v274, 16
      %vm278 = vcmp.lt.s32.totalorder %v275, 16
      %vm279 = vcmp.lt.s32.totalorder %v276, 16
      %v280 = vld [vmem:[%s219] sm:$0xff]
      %v281 = vld [vmem:[%s219 + $0x8] sm:$0xff]
      %v282 = vld [vmem:[%s219 + $0x10] sm:$0xff]
      %283 = vrot.lane.b32.xlu0 %v280, 127
      %v284 = vpop.permute.xlu0 %283
      %285 = vrot.lane.b32.xlu0 %v281, 127
      %v286 = vpop.permute.xlu0 %285
      %287 = vrot.lane.b32.xlu0 %v282, 127
      %v288 = vpop.permute.xlu0 %287
      %vm289 = vcmp.lt.s32.totalorder %v226, 127
      %v290 = vsel %vm289, %v286, %v288
      %v291 = vsel %vm289, %v284, %v286
      %v292 = vsel %vm289, %v288, %v284
      %293 = vrot.lane.b32.xlu0 %v280, 126
      %v294 = vpop.permute.xlu0 %293
      %295 = vrot.lane.b32.xlu0 %v281, 126
      %v296 = vpop.permute.xlu0 %295
      %297 = vrot.lane.b32.xlu0 %v282, 126
      %v298 = vpop.permute.xlu0 %297
      %vm299 = vcmp.lt.s32.totalorder %v226, 126
      %v300 = vsel %vm299, %v296, %v298
      %v301 = vsel %vm299, %v294, %v296
      %v302 = vsel %vm299, %v298, %v294
      %303 = vst [vmem:[#allocation3] sm:$0xff] %v280
      %304 = vst [vmem:[#allocation3 + $0x8] sm:$0xff] %v281
      %305 = vst [vmem:[#allocation3 + $0x10] sm:$0xff] %v282
      %306 = vst [vmem:[#allocation3 + $0x18] sm:$0xff] %v291
      %307 = vst [vmem:[#allocation3 + $0x20] sm:$0xff] %v290
      %308 = vst [vmem:[#allocation3 + $0x28] sm:$0xff] %v292
      %309 = vst [vmem:[#allocation3 + $0x30] sm:$0xff] %v301
      %310 = vst [vmem:[#allocation3 + $0x38] sm:$0xff] %v300
      %311 = vst [vmem:[#allocation3 + $0x40] sm:$0xff] %v302
      %v312 = vld [vmem:[%s219] sm:$0xff]
      %v313 = vld [vmem:[%s219 + $0x8] sm:$0xff]
      %v314 = vld [vmem:[%s219 + $0x10] sm:$0xff]
      %v315 = vld [vmem:[%s219 + $0x18] sm:$0xff]
      %320 = vrot.lane.b32.xlu0 %v312, 104
      %v321 = vpop.permute.xlu0 %320
      %322 = vrot.lane.b32.xlu0 %v313, 104
      %v323 = vpop.permute.xlu0 %322
      %324 = vrot.lane.b32.xlu0 %v314, 104
      %v325 = vpop.permute.xlu0 %324
      %326 = vrot.lane.b32.xlu0 %v315, 104
      %v327 = vpop.permute.xlu0 %326
      %vm328 = vcmask 850944
      %v329 = vsel %vm328, %v321, %v323
      %v330 = vsel %vm328, %v323, %v325
      %v331 = vsel %vm328, %v325, %v327
      %335 = vrot.lane.b32.xlu0 %v329, 127
      %v336 = vpop.permute.xlu0 %335
      %337 = vrot.lane.b32.xlu0 %v330, 127
      %v338 = vpop.permute.xlu0 %337
      %339 = vrot.lane.b32.xlu0 %v331, 127
      %v340 = vpop.permute.xlu0 %339
      %v341 = vsel %vm289, %v338, %v340
      %v342 = vsel %vm289, %v336, %v338
      %v343 = vsel %vm289, %v340, %v336
      %344 = vrot.lane.b32.xlu0 %v329, 126
      %v345 = vpop.permute.xlu0 %344
      %346 = vrot.lane.b32.xlu0 %v330, 126
      %v347 = vpop.permute.xlu0 %346
      %348 = vrot.lane.b32.xlu0 %v331, 126
      %v349 = vpop.permute.xlu0 %348
      %v350 = vsel %vm299, %v347, %v349
      %v351 = vsel %vm299, %v345, %v347
      %v352 = vsel %vm299, %v349, %v345
      %353 = vst [vmem:[#allocation3 + $0x48] sm:$0xff] %v329
      %354 = vst [vmem:[#allocation3 + $0x50] sm:$0xff] %v330
      %355 = vst [vmem:[#allocation3 + $0x58] sm:$0xff] %v331
      %356 = vst [vmem:[#allocation3 + $0x60] sm:$0xff] %v342
      %357 = vst [vmem:[#allocation3 + $0x68] sm:$0xff] %v341
      %358 = vst [vmem:[#allocation3 + $0x70] sm:$0xff] %v343
      %359 = vst [vmem:[#allocation3 + $0x78] sm:$0xff] %v351
      %360 = vst [vmem:[#allocation3 + $0x80] sm:$0xff] %v350
      %361 = vst [vmem:[#allocation3 + $0x88] sm:$0xff] %v352
      %v362 = vld [vmem:[%s219] sm:$0xff]
      %v363 = vld [vmem:[%s219 + $0x8] sm:$0xff]
      %v364 = vld [vmem:[%s219 + $0x10] sm:$0xff]
      %v365 = vld [vmem:[%s219 + $0x18] sm:$0xff]
      %370 = vrot.lane.b32.xlu0 %v362, 80
      %v371 = vpop.permute.xlu0 %370
      %372 = vrot.lane.b32.xlu0 %v363, 80
      %v373 = vpop.permute.xlu0 %372
      %374 = vrot.lane.b32.xlu0 %v364, 80
      %v375 = vpop.permute.xlu0 %374
      %376 = vrot.lane.b32.xlu0 %v365, 80
      %v377 = vpop.permute.xlu0 %376
      %vm378 = vcmask 654336
      %v379 = vsel %vm378, %v371, %v373
      %v380 = vsel %vm378, %v373, %v375
      %v381 = vsel %vm378, %v375, %v377
      %385 = vrot.lane.b32.xlu0 %v379, 127
      %v386 = vpop.permute.xlu0 %385
      %387 = vrot.lane.b32.xlu0 %v380, 127
      %v388 = vpop.permute.xlu0 %387
      %389 = vrot.lane.b32.xlu0 %v381, 127
      %v390 = vpop.permute.xlu0 %389
      %v391 = vsel %vm289, %v388, %v390
      %v392 = vsel %vm289, %v386, %v388
      %v393 = vsel %vm289, %v390, %v386
      %394 = vrot.lane.b32.xlu0 %v379, 126
      %v395 = vpop.permute.xlu0 %394
      %396 = vrot.lane.b32.xlu0 %v380, 126
      %v397 = vpop.permute.xlu0 %396
      %398 = vrot.lane.b32.xlu0 %v381, 126
      %v399 = vpop.permute.xlu0 %398
      %v400 = vsel %vm299, %v397, %v399
      %v401 = vsel %vm299, %v395, %v397
      %v402 = vsel %vm299, %v399, %v395
      %403 = vst [vmem:[#allocation3 + $0x90] sm:$0xff] %v379
      %404 = vst [vmem:[#allocation3 + $0x98] sm:$0xff] %v380
      %405 = vst [vmem:[#allocation3 + $0xa0] sm:$0xff] %v381
      %406 = vst [vmem:[#allocation3 + $0xa8] sm:$0xff] %v392
      %407 = vst [vmem:[#allocation3 + $0xb0] sm:$0xff] %v391
      %408 = vst [vmem:[#allocation3 + $0xb8] sm:$0xff] %v393
      %409 = vst [vmem:[#allocation3 + $0xc0] sm:$0xff] %v401
      %410 = vst [vmem:[#allocation3 + $0xc8] sm:$0xff] %v400
      %411 = vst [vmem:[#allocation3 + $0xd0] sm:$0xff] %v402
      %v412 = vld [vmem:[%s1] sm:$0xff]
      %v413 = vld [vmem:[#allocation3] sm:$0xff]
      %v414 = vld [vmem:[#allocation3 + $0x8] sm:$0xff]
      %v415 = vld [vmem:[#allocation3 + $0x10] sm:$0xff]
      %v416 = vld [vmem:[#allocation3 + $0x18] sm:$0xff]
      %v417 = vld [vmem:[#allocation3 + $0x20] sm:$0xff]
      %v418 = vld [vmem:[#allocation3 + $0x28] sm:$0xff]
      %v419 = vld [vmem:[#allocation3 + $0x30] sm:$0xff]
      %v420 = vld [vmem:[#allocation3 + $0x38] sm:$0xff]
      %v421 = vld [vmem:[#allocation3 + $0x40] sm:$0xff]
      %v422 = vld [vmem:[#allocation3 + $0x48] sm:$0xff]
      %v423 = vld [vmem:[#allocation3 + $0x50] sm:$0xff]
      %v424 = vld [vmem:[#allocation3 + $0x58] sm:$0xff]
      %v425 = vld [vmem:[#allocation3 + $0x60] sm:$0xff]
      %v426 = vld [vmem:[#allocation3 + $0x68] sm:$0xff]
      %v427 = vld [vmem:[#allocation3 + $0x70] sm:$0xff]
      %v428 = vld [vmem:[#allocation3 + $0x78] sm:$0xff]
      %v429 = vld [vmem:[#allocation3 + $0x80] sm:$0xff]
      %v430 = vld [vmem:[#allocation3 + $0x88] sm:$0xff]
      %v431 = vld [vmem:[#allocation3 + $0x90] sm:$0xff]
      %v432 = vld [vmem:[#allocation3 + $0x98] sm:$0xff]
      %v433 = vld [vmem:[#allocation3 + $0xa0] sm:$0xff]
      %v434 = vld [vmem:[#allocation3 + $0xa8] sm:$0xff]
      %v435 = vld [vmem:[#allocation3 + $0xb0] sm:$0xff]
      %v436 = vld [vmem:[#allocation3 + $0xb8] sm:$0xff]
      %v437 = vld [vmem:[#allocation3 + $0xc0] sm:$0xff]
      %v438 = vld [vmem:[#allocation3 + $0xc8] sm:$0xff]
      %v439 = vld [vmem:[#allocation3 + $0xd0] sm:$0xff]
      %v440 = vld [vmem:[%s2] sm:$0xff]
      %442 = vset.pattern.permute.xlu0 0
      %443 = vperm.xlu0 %442, %v440
      %v444 = vpop.permute.xlu0 %443
      %vm446 = vcmask 588800
      %v448 = vsel %vm446, %v412, 0
      %450 = vmatprep.subr.mxu0 0.0
      %451 = vmatpush1.msra.mxu0 0.0
      %452 = vmatprep.subr.mxu0 0.0
      %453 = vmatpush1.msra.mxu0 0.0
      %454 = vmatprep.subr.mxu0 0.0
      %455 = vmatpush1.msra.mxu0 0.0
      %456 = vmatprep.subr.mxu0 0.0
      %457 = vmatpush1.msra.mxu0 0.0
      %458 = vmatprep.subr.mxu0 0.0
      %459 = vmatpush1.msra.mxu0 0.0
      %460 = vmatprep.subr.mxu0 0.0
      %461 = vmatpush1.msra.mxu0 0.0
      %462 = vmatprep.subr.mxu0 0.0
      %463 = vmatpush1.msra.mxu0 0.0
      %464 = vmatprep.subr.mxu0 %v438
      %465 = vmatpush1.msra.mxu0 %v437
      %466 = vmatprep.subr.mxu0 %v435
      %467 = vmatpush1.msra.mxu0 %v434
      %468 = vmatprep.subr.mxu0 %v432
      %469 = vmatpush1.msra.mxu0 %v431
      %470 = vmatprep.subr.mxu0 %v429
      %471 = vmatpush1.msra.mxu0 %v428
      %472 = vmatprep.subr.mxu0 %v426
      %473 = vmatpush1.msra.mxu0 %v425
      %474 = vmatprep.subr.mxu0 %v423
      %475 = vmatpush1.msra.mxu0 %v422
      %476 = vmatprep.subr.mxu0 %v420
      %477 = vmatpush1.msra.mxu0 %v419
      %478 = vmatprep.subr.mxu0 %v417
      %479 = vmatpush1.msra.mxu0 %v416
      %480 = vmatprep.subr.mxu0 %v414
      %481 = vmatpush1.msra.mxu0 %v413
      %482 = vmatprep.subr.mxu0 0.0
      %483 = vmatpush2.msra.mxu0 0.0
      %484 = vmatprep.subr.mxu0 0.0
      %485 = vmatpush2.msra.mxu0 0.0
      %486 = vmatprep.subr.mxu0 0.0
      %487 = vmatpush2.msra.mxu0 0.0
      %488 = vmatprep.subr.mxu0 0.0
      %489 = vmatpush2.msra.mxu0 0.0
      %490 = vmatprep.subr.mxu0 0.0
      %491 = vmatpush2.msra.mxu0 0.0
      %492 = vmatprep.subr.mxu0 0.0
      %493 = vmatpush2.msra.mxu0 0.0
      %494 = vmatprep.subr.mxu0 0.0
      %495 = vmatpush2.msra.mxu0 0.0
      %496 = vmatprep.subr.mxu0 0.0
      %497 = vmatpush2.msra.mxu0 0.0
      %498 = vmatprep.subr.mxu0 0.0
      %499 = vmatpush2.msra.mxu0 0.0
      %500 = vmatprep.subr.mxu0 0.0
      %501 = vmatpush2.msra.mxu0 0.0
      %502 = vmatprep.subr.mxu0 0.0
      %503 = vmatpush2.msra.mxu0 0.0
      %504 = vmatprep.subr.mxu0 0.0
      %505 = vmatpush2.msra.mxu0 0.0
      %506 = vmatprep.subr.mxu0 0.0
      %507 = vmatpush2.msra.mxu0 0.0
      %508 = vmatprep.subr.mxu0 0.0
      %509 = vmatpush2.msra.mxu0 0.0
      %510 = vmatprep.subr.mxu0 0.0
      %511 = vmatpush2.msra.mxu0 0.0
      %512 = vmatprep.subr.mxu0 0.0
      %513 = vmatpush2.msra.mxu0 0.0
      %514 = vmatprep.mubr.f32.mxu0 0.0
      %515 = vmatmul.mubr.f32.gmra.mxu0 %v448
      %v516 = vpop.f32.mrf.mxu0
      %v517 = vadd.f32 %v444, %v516
      %v518 = vpop.f32.mrf.mxu0
      %v519 = vadd.f32 %v444, %v518
      %520 = vdwg.mxu0
      %521 = vmatprep.subr.mxu0 0.0
      %522 = vmatpush1.msra.mxu0 0.0
      %523 = vmatprep.subr.mxu0 0.0
      %524 = vmatpush1.msra.mxu0 0.0
      %525 = vmatprep.subr.mxu0 0.0
      %526 = vmatpush1.msra.mxu0 0.0
      %527 = vmatprep.subr.mxu0 0.0
      %528 = vmatpush1.msra.mxu0 0.0
      %529 = vmatprep.subr.mxu0 0.0
      %530 = vmatpush1.msra.mxu0 0.0
      %531 = vmatprep.subr.mxu0 0.0
      %532 = vmatpush1.msra.mxu0 0.0
      %533 = vmatprep.subr.mxu0 0.0
      %534 = vmatpush1.msra.mxu0 0.0
      %535 = vmatprep.subr.mxu0 0.0
      %536 = vmatpush1.msra.mxu0 %v439
      %537 = vmatprep.subr.mxu0 0.0
      %538 = vmatpush1.msra.mxu0 %v436
      %539 = vmatprep.subr.mxu0 0.0
      %540 = vmatpush1.msra.mxu0 %v433
      %541 = vmatprep.subr.mxu0 0.0
      %542 = vmatpush1.msra.mxu0 %v430
      %543 = vmatprep.subr.mxu0 0.0
      %544 = vmatpush1.msra.mxu0 %v427
      %545 = vmatprep.subr.mxu0 0.0
      %546 = vmatpush1.msra.mxu0 %v424
      %547 = vmatprep.subr.mxu0 0.0
      %548 = vmatpush1.msra.mxu0 %v421
      %549 = vmatprep.subr.mxu0 0.0
      %550 = vmatpush1.msra.mxu0 %v418
      %551 = vmatprep.subr.mxu0 0.0
      %552 = vmatpush1.msra.mxu0 %v415
      %553 = vmatprep.subr.mxu0 0.0
      %554 = vmatpush2.msra.mxu0 0.0
      %555 = vmatprep.subr.mxu0 0.0
      %556 = vmatpush2.msra.mxu0 0.0
      %557 = vmatprep.subr.mxu0 0.0
      %558 = vmatpush2.msra.mxu0 0.0
      %559 = vmatprep.subr.mxu0 0.0
      %560 = vmatpush2.msra.mxu0 0.0
      %561 = vmatprep.subr.mxu0 0.0
      %562 = vmatpush2.msra.mxu0 0.0
      %563 = vmatprep.subr.mxu0 0.0
      %564 = vmatpush2.msra.mxu0 0.0
      %565 = vmatprep.subr.mxu0 0.0
      %566 = vmatpush2.msra.mxu0 0.0
      %567 = vmatprep.subr.mxu0 0.0
      %568 = vmatpush2.msra.mxu0 0.0
      %569 = vmatprep.subr.mxu0 0.0
      %570 = vmatpush2.msra.mxu0 0.0
      %571 = vmatprep.subr.mxu0 0.0
      %572 = vmatpush2.msra.mxu0 0.0
      %573 = vmatprep.subr.mxu0 0.0
      %574 = vmatpush2.msra.mxu0 0.0
      %575 = vmatprep.subr.mxu0 0.0
      %576 = vmatpush2.msra.mxu0 0.0
      %577 = vmatprep.subr.mxu0 0.0
      %578 = vmatpush2.msra.mxu0 0.0
      %579 = vmatprep.subr.mxu0 0.0
      %580 = vmatpush2.msra.mxu0 0.0
      %581 = vmatprep.subr.mxu0 0.0
      %582 = vmatpush2.msra.mxu0 0.0
      %583 = vmatprep.subr.mxu0 0.0
      %584 = vmatpush2.msra.mxu0 0.0
      %585 = vmatprep.mubr.f32.mxu0 0.0
      %586 = vmatmul.mubr.f32.gmra.mxu0 %v448
      %v587 = vpop.f32.mrf.mxu0
      %v588 = vadd.f32 %v444, %v587
      %v589 = vpop.f32.mrf.mxu0
      %590 = vdwg.mxu0
      %v591 = vmax.f32 %v517, 0.0
      %v592 = vmax.f32 %v519, 0.0
      %v593 = vmax.f32 %v588, 0.0
      %v594 = vsel %vm277, %v591, 0.0
      %v595 = vsel %vm278, %v592, 0.0
      %v596 = vsel %vm279, %v593, 0.0
      %vm597 = vcmask 203776
      %598 = vst.msk [vmem:[#allocation2] sm:$0xff] %vm597, 0.0
      %vm599 = vcmask 408776
      %600 = vst.msk [vmem:[#allocation2 + $0x18] sm:$0xff] %vm599, 0.0
      %604 = vrot.lane.b32.xlu0 %v594, 25
      %v605 = vpop.permute.xlu0 %604
      %606 = vrot.lane.b32.xlu0 %v595, 25
      %v607 = vpop.permute.xlu0 %606
      %608 = vrot.lane.b32.xlu0 %v596, 25
      %v609 = vpop.permute.xlu0 %608
      %v610 = vsel %vm597, %v605, %v607
      %v611 = vsel %vm597, %v607, %v609
      %vm616 = vcmask 1047752
      %617 = vst.msk [vmem:[#allocation2] sm:$0xff] %vm616, %v605
      %618 = vst [vmem:[#allocation2 + $0x8] sm:$0xff] %v610
      %619 = vst [vmem:[#allocation2 + $0x10] sm:$0xff] %v611
      %620 = vst.msk [vmem:[#allocation2 + $0x18] sm:$0xff] %vm597, %v609
      %v621 = vld [vmem:[#allocation2] sm:$0xff]
      %v622 = vld [vmem:[#allocation2 + $0x8] sm:$0xff]
      %v623 = vld [vmem:[#allocation2 + $0x10] sm:$0xff]
      %624 = vrot.lane.b32.xlu0 %v621, 127
      %v625 = vpop.permute.xlu0 %624
      %626 = vrot.lane.b32.xlu0 %v622, 127
      %v627 = vpop.permute.xlu0 %626
      %628 = vrot.lane.b32.xlu0 %v623, 127
      %v629 = vpop.permute.xlu0 %628
      %v630 = vsel %vm289, %v627, %v629
      %v631 = vsel %vm289, %v625, %v627
      %v632 = vsel %vm289, %v629, %v625
      %633 = vrot.lane.b32.xlu0 %v621, 126
      %v634 = vpop.permute.xlu0 %633
      %635 = vrot.lane.b32.xlu0 %v622, 126
      %v636 = vpop.permute.xlu0 %635
      %637 = vrot.lane.b32.xlu0 %v623, 126
      %v638 = vpop.permute.xlu0 %637
      %v639 = vsel %vm299, %v636, %v638
      %v640 = vsel %vm299, %v634, %v636
      %v641 = vsel %vm299, %v638, %v634
      %642 = vst [vmem:[#allocation4] sm:$0xff] %v621
      %643 = vst [vmem:[#allocation4 + $0x8] sm:$0xff] %v622
      %644 = vst [vmem:[#allocation4 + $0x10] sm:$0xff] %v623
      %645 = vst [vmem:[#allocation4 + $0x18] sm:$0xff] %v631
      %646 = vst [vmem:[#allocation4 + $0x20] sm:$0xff] %v630
      %647 = vst [vmem:[#allocation4 + $0x28] sm:$0xff] %v632
      %648 = vst [vmem:[#allocation4 + $0x30] sm:$0xff] %v640
      %649 = vst [vmem:[#allocation4 + $0x38] sm:$0xff] %v639
      %650 = vst [vmem:[#allocation4 + $0x40] sm:$0xff] %v641
      %v651 = vld [vmem:[#allocation2] sm:$0xff]
      %v652 = vld [vmem:[#allocation2 + $0x8] sm:$0xff]
      %v653 = vld [vmem:[#allocation2 + $0x10] sm:$0xff]
      %v654 = vld [vmem:[#allocation2 + $0x18] sm:$0xff]
      %659 = vrot.lane.b32.xlu0 %v651, 104
      %v660 = vpop.permute.xlu0 %659
      %661 = vrot.lane.b32.xlu0 %v652, 104
      %v662 = vpop.permute.xlu0 %661
      %663 = vrot.lane.b32.xlu0 %v653, 104
      %v664 = vpop.permute.xlu0 %663
      %665 = vrot.lane.b32.xlu0 %v654, 104
      %v666 = vpop.permute.xlu0 %665
      %v667 = vsel %vm328, %v660, %v662
      %v668 = vsel %vm328, %v662, %v664
      %v669 = vsel %vm328, %v664, %v666
      %673 = vrot.lane.b32.xlu0 %v667, 127
      %v674 = vpop.permute.xlu0 %673
      %675 = vrot.lane.b32.xlu0 %v668, 127
      %v676 = vpop.permute.xlu0 %675
      %677 = vrot.lane.b32.xlu0 %v669, 127
      %v678 = vpop.permute.xlu0 %677
      %v679 = vsel %vm289, %v676, %v678
      %v680 = vsel %vm289, %v674, %v676
      %v681 = vsel %vm289, %v678, %v674
      %682 = vrot.lane.b32.xlu0 %v667, 126
      %v683 = vpop.permute.xlu0 %682
      %684 = vrot.lane.b32.xlu0 %v668, 126
      %v685 = vpop.permute.xlu0 %684
      %686 = vrot.lane.b32.xlu0 %v669, 126
      %v687 = vpop.permute.xlu0 %686
      %v688 = vsel %vm299, %v685, %v687
      %v689 = vsel %vm299, %v683, %v685
      %v690 = vsel %vm299, %v687, %v683
      %691 = vst [vmem:[#allocation4 + $0x48] sm:$0xff] %v667
      %692 = vst [vmem:[#allocation4 + $0x50] sm:$0xff] %v668
      %693 = vst [vmem:[#allocation4 + $0x58] sm:$0xff] %v669
      %694 = vst [vmem:[#allocation4 + $0x60] sm:$0xff] %v680
      %695 = vst [vmem:[#allocation4 + $0x68] sm:$0xff] %v679
      %696 = vst [vmem:[#allocation4 + $0x70] sm:$0xff] %v681
      %697 = vst [vmem:[#allocation4 + $0x78] sm:$0xff] %v689
      %698 = vst [vmem:[#allocation4 + $0x80] sm:$0xff] %v688
      %699 = vst [vmem:[#allocation4 + $0x88] sm:$0xff] %v690
      %v700 = vld [vmem:[#allocation2] sm:$0xff]
      %v701 = vld [vmem:[#allocation2 + $0x8] sm:$0xff]
      %v702 = vld [vmem:[#allocation2 + $0x10] sm:$0xff]
      %v703 = vld [vmem:[#allocation2 + $0x18] sm:$0xff]
      %708 = vrot.lane.b32.xlu0 %v700, 80
      %v709 = vpop.permute.xlu0 %708
      %710 = vrot.lane.b32.xlu0 %v701, 80
      %v711 = vpop.permute.xlu0 %710
      %712 = vrot.lane.b32.xlu0 %v702, 80
      %v713 = vpop.permute.xlu0 %712
      %714 = vrot.lane.b32.xlu0 %v703, 80
      %v715 = vpop.permute.xlu0 %714
      %v716 = vsel %vm378, %v709, %v711
      %v717 = vsel %vm378, %v711, %v713
      %v718 = vsel %vm378, %v713, %v715
      %722 = vrot.lane.b32.xlu0 %v716, 127
      %v723 = vpop.permute.xlu0 %722
      %724 = vrot.lane.b32.xlu0 %v717, 127
      %v725 = vpop.permute.xlu0 %724
      %726 = vrot.lane.b32.xlu0 %v718, 127
      %v727 = vpop.permute.xlu0 %726
      %v728 = vsel %vm289, %v725, %v727
      %v729 = vsel %vm289, %v723, %v725
      %v730 = vsel %vm289, %v727, %v723
      %731 = vrot.lane.b32.xlu0 %v716, 126
      %v732 = vpop.permute.xlu0 %731
      %733 = vrot.lane.b32.xlu0 %v717, 126
      %v734 = vpop.permute.xlu0 %733
      %735 = vrot.lane.b32.xlu0 %v718, 126
      %v736 = vpop.permute.xlu0 %735
      %v737 = vsel %vm299, %v734, %v736
      %v738 = vsel %vm299, %v732, %v734
      %v739 = vsel %vm299, %v736, %v732
      %740 = vst [vmem:[#allocation4 + $0x90] sm:$0xff] %v716
      %741 = vst [vmem:[#allocation4 + $0x98] sm:$0xff] %v717
      %742 = vst [vmem:[#allocation4 + $0xa0] sm:$0xff] %v718
      %743 = vst [vmem:[#allocation4 + $0xa8] sm:$0xff] %v729
      %744 = vst [vmem:[#allocation4 + $0xb0] sm:$0xff] %v728
      %745 = vst [vmem:[#allocation4 + $0xb8] sm:$0xff] %v730
      %746 = vst [vmem:[#allocation4 + $0xc0] sm:$0xff] %v738
      %747 = vst [vmem:[#allocation4 + $0xc8] sm:$0xff] %v737
      %748 = vst [vmem:[#allocation4 + $0xd0] sm:$0xff] %v739
      %v749 = vld [vmem:[%s3] sm:$0xff]
      %v750 = vld [vmem:[#allocation4] sm:$0xff]
      %v751 = vld [vmem:[#allocation4 + $0x8] sm:$0xff]
      %v752 = vld [vmem:[#allocation4 + $0x10] sm:$0xff]
      %v753 = vld [vmem:[#allocation4 + $0x18] sm:$0xff]
      %v754 = vld [vmem:[#allocation4 + $0x20] sm:$0xff]
      %v755 = vld [vmem:[#allocation4 + $0x28] sm:$0xff]
      %v756 = vld [vmem:[#allocation4 + $0x30] sm:$0xff]
      %v757 = vld [vmem:[#allocation4 + $0x38] sm:$0xff]
      %v758 = vld [vmem:[#allocation4 + $0x40] sm:$0xff]
      %v759 = vld [vmem:[#allocation4 + $0x48] sm:$0xff]
      %v760 = vld [vmem:[#allocation4 + $0x50] sm:$0xff]
      %v761 = vld [vmem:[#allocation4 + $0x58] sm:$0xff]
      %v762 = vld [vmem:[#allocation4 + $0x60] sm:$0xff]
      %v763 = vld [vmem:[#allocation4 + $0x68] sm:$0xff]
      %v764 = vld [vmem:[#allocation4 + $0x70] sm:$0xff]
      %v765 = vld [vmem:[#allocation4 + $0x78] sm:$0xff]
      %v766 = vld [vmem:[#allocation4 + $0x80] sm:$0xff]
      %v767 = vld [vmem:[#allocation4 + $0x88] sm:$0xff]
      %v768 = vld [vmem:[#allocation4 + $0x90] sm:$0xff]
      %v769 = vld [vmem:[#allocation4 + $0x98] sm:$0xff]
      %v770 = vld [vmem:[#allocation4 + $0xa0] sm:$0xff]
      %v771 = vld [vmem:[#allocation4 + $0xa8] sm:$0xff]
      %v772 = vld [vmem:[#allocation4 + $0xb0] sm:$0xff]
      %v773 = vld [vmem:[#allocation4 + $0xb8] sm:$0xff]
      %v774 = vld [vmem:[#allocation4 + $0xc0] sm:$0xff]
      %v775 = vld [vmem:[#allocation4 + $0xc8] sm:$0xff]
      %v776 = vld [vmem:[#allocation4 + $0xd0] sm:$0xff]
      %v777 = vld [vmem:[%s4] sm:$0xff]
      %779 = vset.pattern.permute.xlu0 0
      %780 = vperm.xlu0 %779, %v777
      %v781 = vpop.permute.xlu0 %780
      %v784 = vsel %vm446, %v749, 0
      %786 = vmatprep.subr.mxu0 0.0
      %787 = vmatpush1.msra.mxu0 0.0
      %788 = vmatprep.subr.mxu0 0.0
      %789 = vmatpush1.msra.mxu0 0.0
      %790 = vmatprep.subr.mxu0 0.0
      %791 = vmatpush1.msra.mxu0 0.0
      %792 = vmatprep.subr.mxu0 0.0
      %793 = vmatpush1.msra.mxu0 0.0
      %794 = vmatprep.subr.mxu0 0.0
      %795 = vmatpush1.msra.mxu0 0.0
      %796 = vmatprep.subr.mxu0 0.0
      %797 = vmatpush1.msra.mxu0 0.0
      %798 = vmatprep.subr.mxu0 0.0
      %799 = vmatpush1.msra.mxu0 0.0
      %800 = vmatprep.subr.mxu0 %v775
      %801 = vmatpush1.msra.mxu0 %v774
      %802 = vmatprep.subr.mxu0 %v772
      %803 = vmatpush1.msra.mxu0 %v771
      %804 = vmatprep.subr.mxu0 %v769
      %805 = vmatpush1.msra.mxu0 %v768
      %806 = vmatprep.subr.mxu0 %v766
      %807 = vmatpush1.msra.mxu0 %v765
      %808 = vmatprep.subr.mxu0 %v763
      %809 = vmatpush1.msra.mxu0 %v762
      %810 = vmatprep.subr.mxu0 %v760
      %811 = vmatpush1.msra.mxu0 %v759
      %812 = vmatprep.subr.mxu0 %v757
      %813 = vmatpush1.msra.mxu0 %v756
      %814 = vmatprep.subr.mxu0 %v754
      %815 = vmatpush1.msra.mxu0 %v753
      %816 = vmatprep.subr.mxu0 %v751
      %817 = vmatpush1.msra.mxu0 %v750
      %818 = vmatprep.subr.mxu0 0.0
      %819 = vmatpush2.msra.mxu0 0.0
      %820 = vmatprep.subr.mxu0 0.0
      %821 = vmatpush2.msra.mxu0 0.0
      %822 = vmatprep.subr.mxu0 0.0
      %823 = vmatpush2.msra.mxu0 0.0
      %824 = vmatprep.subr.mxu0 0.0
      %825 = vmatpush2.msra.mxu0 0.0
      %826 = vmatprep.subr.mxu0 0.0
      %827 = vmatpush2.msra.mxu0 0.0
      %828 = vmatprep.subr.mxu0 0.0
      %829 = vmatpush2.msra.mxu0 0.0
      %830 = vmatprep.subr.mxu0 0.0
      %831 = vmatpush2.msra.mxu0 0.0
      %832 = vmatprep.subr.mxu0 0.0
      %833 = vmatpush2.msra.mxu0 0.0
      %834 = vmatprep.subr.mxu0 0.0
      %835 = vmatpush2.msra.mxu0 0.0
      %836 = vmatprep.subr.mxu0 0.0
      %837 = vmatpush2.msra.mxu0 0.0
      %838 = vmatprep.subr.mxu0 0.0
      %839 = vmatpush2.msra.mxu0 0.0
      %840 = vmatprep.subr.mxu0 0.0
      %841 = vmatpush2.msra.mxu0 0.0
      %842 = vmatprep.subr.mxu0 0.0
      %843 = vmatpush2.msra.mxu0 0.0
      %844 = vmatprep.subr.mxu0 0.0
      %845 = vmatpush2.msra.mxu0 0.0
      %846 = vmatprep.subr.mxu0 0.0
      %847 = vmatpush2.msra.mxu0 0.0
      %848 = vmatprep.subr.mxu0 0.0
      %849 = vmatpush2.msra.mxu0 0.0
      %850 = vmatprep.mubr.f32.mxu0 0.0
      %851 = vmatmul.mubr.f32.gmra.mxu0 %v784
      %v852 = vpop.f32.mrf.mxu0
      %v853 = vadd.f32 %v781, %v852
      %v854 = vpop.f32.mrf.mxu0
      %v855 = vadd.f32 %v781, %v854
      %856 = vdwg.mxu0
      %857 = vmatprep.subr.mxu0 0.0
      %858 = vmatpush1.msra.mxu0 0.0
      %859 = vmatprep.subr.mxu0 0.0
      %860 = vmatpush1.msra.mxu0 0.0
      %861 = vmatprep.subr.mxu0 0.0
      %862 = vmatpush1.msra.mxu0 0.0
      %863 = vmatprep.subr.mxu0 0.0
      %864 = vmatpush1.msra.mxu0 0.0
      %865 = vmatprep.subr.mxu0 0.0
      %866 = vmatpush1.msra.mxu0 0.0
      %867 = vmatprep.subr.mxu0 0.0
      %868 = vmatpush1.msra.mxu0 0.0
      %869 = vmatprep.subr.mxu0 0.0
      %870 = vmatpush1.msra.mxu0 0.0
      %871 = vmatprep.subr.mxu0 0.0
      %872 = vmatpush1.msra.mxu0 %v776
      %873 = vmatprep.subr.mxu0 0.0
      %874 = vmatpush1.msra.mxu0 %v773
      %875 = vmatprep.subr.mxu0 0.0
      %876 = vmatpush1.msra.mxu0 %v770
      %877 = vmatprep.subr.mxu0 0.0
      %878 = vmatpush1.msra.mxu0 %v767
      %879 = vmatprep.subr.mxu0 0.0
      %880 = vmatpush1.msra.mxu0 %v764
      %881 = vmatprep.subr.mxu0 0.0
      %882 = vmatpush1.msra.mxu0 %v761
      %883 = vmatprep.subr.mxu0 0.0
      %884 = vmatpush1.msra.mxu0 %v758
      %885 = vmatprep.subr.mxu0 0.0
      %886 = vmatpush1.msra.mxu0 %v755
      %887 = vmatprep.subr.mxu0 0.0
      %888 = vmatpush1.msra.mxu0 %v752
      %889 = vmatprep.subr.mxu0 0.0
      %890 = vmatpush2.msra.mxu0 0.0
      %891 = vmatprep.subr.mxu0 0.0
      %892 = vmatpush2.msra.mxu0 0.0
      %893 = vmatprep.subr.mxu0 0.0
      %894 = vmatpush2.msra.mxu0 0.0
      %895 = vmatprep.subr.mxu0 0.0
      %896 = vmatpush2.msra.mxu0 0.0
      %897 = vmatprep.subr.mxu0 0.0
      %898 = vmatpush2.msra.mxu0 0.0
      %899 = vmatprep.subr.mxu0 0.0
      %900 = vmatpush2.msra.mxu0 0.0
      %901 = vmatprep.subr.mxu0 0.0
      %902 = vmatpush2.msra.mxu0 0.0
      %903 = vmatprep.subr.mxu0 0.0
      %904 = vmatpush2.msra.mxu0 0.0
      %905 = vmatprep.subr.mxu0 0.0
      %906 = vmatpush2.msra.mxu0 0.0
      %907 = vmatprep.subr.mxu0 0.0
      %908 = vmatpush2.msra.mxu0 0.0
      %909 = vmatprep.subr.mxu0 0.0
      %910 = vmatpush2.msra.mxu0 0.0
      %911 = vmatprep.subr.mxu0 0.0
      %912 = vmatpush2.msra.mxu0 0.0
      %913 = vmatprep.subr.mxu0 0.0
      %914 = vmatpush2.msra.mxu0 0.0
      %915 = vmatprep.subr.mxu0 0.0
      %916 = vmatpush2.msra.mxu0 0.0
      %917 = vmatprep.subr.mxu0 0.0
      %918 = vmatpush2.msra.mxu0 0.0
      %919 = vmatprep.subr.mxu0 0.0
      %920 = vmatpush2.msra.mxu0 0.0
      %921 = vmatprep.mubr.f32.mxu0 0.0
      %922 = vmatmul.mubr.f32.gmra.mxu0 %v784
      %v923 = vpop.f32.mrf.mxu0
      %v924 = vadd.f32 %v781, %v923
      %v925 = vpop.f32.mrf.mxu0
      %926 = vdwg.mxu0
      %v927 = vmax.f32 %v853, 0.0
      %v928 = vmax.f32 %v855, 0.0
      %v929 = vmax.f32 %v924, 0.0
      %930 = vst [vmem:[%s224] sm:$0xff] %v927
      %931 = vst [vmem:[%s224 + $0x8] sm:$0xff] %v928
      %932 = vst [vmem:[%s224 + $0x10] sm:$0xff] %v929
      %p933 = scmp.lt.s32.totalorder %s16, 1
      %s934 = scalar_select %p933, %s16, 1
      %s935 = smul.addr %s934, 3
      %s936 = smul.addr %s935, 8
      %s937 = scalar_lea.vmem %s5, %s936
      // Predicated region
      $region41: #{_lambda_.1} parent=39 // pred_check
        %p938 = pneg %p144
      $region42: #{_lambda_.1} parent=39 // pred_check_branch
        %940 = sbr.rel (%p938) target = $region44
      $region43: #{_lambda_.1} parent=39 // pred_region
        _
      $region44: #{_lambda_.1} parent=39 // pred_fallthru
        _
    $region40: #{_lambda_.1} parent=5 // pred_fallthru
      _
    %p941 = scmp.le.s32.totalorder 2, %s11
    // Predicated region
    $region45: #{_lambda_.1} parent=5 // pred_check
      %p942 = pneg %p941
    $region46: #{_lambda_.1} parent=5 // pred_check_branch
      %944 = sbr.rel (%p942) target = $region48
    $region47: #{_lambda_.1} parent=5 // pred_region
      %s945 = ssub.s32 %s11, 2
      // Predicated region
      $region49: #{_lambda_.1} parent=47 // pred_check
        %p946 = pneg %p150
      $region50: #{_lambda_.1} parent=47 // pred_check_branch
        %948 = sbr.rel (%p946) target = $region52
      $region51: #{_lambda_.1} parent=47 // pred_region
        %p949 = scmp.lt.s32.totalorder %s17, 1
        %s950 = scalar_select %p949, %s17, 1
        %s951 = smul.addr %s950, 3
        %s952 = smul.addr %s951, 8
        %s953 = scalar_lea.vmem %s5, %s952
      $region52: #{_lambda_.1} parent=47 // pred_fallthru
        _
    $region48: #{_lambda_.1} parent=5 // pred_fallthru
      _
  $region6: #{_lambda_.1} parent=0 // loop_footer
    %s15 = sadd.s32 1, %s11
  $region7: #{_lambda_.1} parent=0 // loop_footer_branch
    %10 = sbr.rel target = $region3
  $region8: #{_lambda_.1} parent=0 // loop_exit
    _

</llo_original>
